<compile_context>
chip_gen: v7x
topology: tpu7x:2x2x1
jax: 0.10.0
libtpu: 0.0.40
codegen_flags: <defaults>
</compile_context>

<pallas_src>
import functools

import jax
import jax.numpy as jnp
from jax.experimental import pallas as pl
from jax.experimental.pallas import tpu as pltpu


def _contrastive_kernel(q_ref, k_ref, out_ref, qn_sc, m_sc, l_sc, pos_sc, *,
                        temperature, n_kv):
    """One (batch_block, kv_block) grid step.

    q_ref:   (Bb, C, N)    resident across the kv axis
    k_ref:   (Bb, C, Tkv)  current kv tile
    out_ref: (Bb, 1, N)    per-row losses, written at the last kv step
    qn_sc:   (Bb, C, N)    q, L1-normalized and pre-scaled by 1/temperature
    m_sc, l_sc, pos_sc: (Bb, 1, N) running max / denominator / positive logits
    """
    kv = pl.program_id(1)
    bb = q_ref.shape[0]
    tkv = k_ref.shape[2]

    @pl.when(kv == 0)
    def _init():
        # L1-normalize q once per batch block and fold in 1/temperature.
        # Reductions over C ride the sublane axis; N stays on lanes.
        for b in range(bb):  # static unroll, bb is small
            q = q_ref[b].astype(jnp.float32)                           # (C, N)
            inv_q = 1.0 / (temperature * jnp.maximum(
                jnp.sum(jnp.abs(q), axis=0, keepdims=True), 1e-12))    # (1, N)
            qn_sc[b] = q * inv_q
        m_sc[...] = jnp.full(m_sc.shape, -jnp.inf, dtype=jnp.float32)
        l_sc[...] = jnp.zeros(l_sc.shape, dtype=jnp.float32)

    for b in range(bb):  # static unroll over the batch block
        qn = qn_sc[b]                                                  # (C, N)
        k = k_ref[b].astype(jnp.float32)                               # (C, Tkv)
        inv_k = 1.0 / jnp.maximum(
            jnp.sum(jnp.abs(k), axis=0, keepdims=True), 1e-12)
        kn = k * inv_k                                                 # (C, Tkv)

        # Positive logits for the queries owned by this kv tile (elementwise
        # dot over C; the 1/temperature factor already rides in qn).
        if n_kv == 1:
            pos_sc[b] = jnp.sum(qn * kn, axis=0, keepdims=True)        # (1, N)
        else:
            col0 = pl.multiple_of(kv * tkv, tkv)
            qn_cols = qn_sc[b, :, pl.ds(col0, tkv)]                    # (C, Tkv)
            pos_sc[b, :, pl.ds(col0, tkv)] = jnp.sum(
                qn_cols * kn, axis=0, keepdims=True)

        # Unmasked similarity tile: keys on sublanes, queries on lanes.
        # Canonical MXU matmul (Tkv, C) @ (C, N); only a small in-VMEM
        # transpose of the current k tile, no HBM-level transposes.
        # TODO(synk): on v6e/v7x the operands could be cast to bfloat16 here
        # (keeping preferred_element_type=f32) for higher MXU throughput.
        s = jnp.dot(kn.T, qn, preferred_element_type=jnp.float32)      # (Tkv, N)

        # Online logsumexp over the key axis (sublane reduce).
        m_prev = m_sc[b]                                               # (1, N)
        m_new = jnp.maximum(m_prev, jnp.max(s, axis=0, keepdims=True))
        l_sc[b] = (jnp.exp(m_prev - m_new) * l_sc[b]
                   + jnp.sum(jnp.exp(s - m_new), axis=0, keepdims=True))
        m_sc[b] = m_new

    @pl.when(kv == n_kv - 1)
    def _finalize():
        # loss_i = logsumexp_j(s_ij) - l_pos_i   (s_ii == l_pos, so no mask).
        out_ref[...] = m_sc[...] + jnp.log(l_sc[...]) - pos_sc[...]


def _choose_tiles(batch, c, n):
    """Pick (batch_block, kv_tile, vmem_limit_bytes) for the kernel."""
    # kv tile: largest lane-aligned tile that divides N, else the full N.
    tkv = n
    for cand in (512, 256, 128):
        if n % cand == 0:
            tkv = cand
            break

    def est_bytes(bb):
        # double-buffered q/k blocks + qn scratch + accumulators/out + s temps
        return 4 * bb * (3 * c * n + 2 * c * tkv + 6 * n + 3 * tkv * n)

    # Batch block: amortize the ~0.35us/grid-step overhead for small per-step
    # work while keeping the working set comfortably inside VMEM.
    bb = 1
    for cand in (8, 4, 2):
        if batch % cand == 0 and est_bytes(cand) <= 20 * 1024 * 1024:
            bb = cand
            break

    vmem_limit = int(min(60 * 1024 * 1024,
                         max(32 * 1024 * 1024, 2 * est_bytes(bb))))
    return bb, tkv, vmem_limit


def contrastive_loss_sup(feat_q, feat_k, temperature=0.07):
    """Pallas equivalent of contrastive_loss_sup.forward (returns scalar loss)."""
    assert feat_q.shape == feat_k.shape, (feat_q.shape, feat_k.shape)
    batch, dim = feat_q.shape[0], feat_q.shape[1]

    # (B, C, H, W) -> (B, C, N): a pure reshape, no HBM transpose pass.
    q = feat_q.reshape(batch, dim, -1)
    k = feat_k.reshape(batch, dim, -1)
    n = q.shape[-1]

    bb, tkv, vmem_limit = _choose_tiles(batch, dim, n)
    n_kv = n // tkv

    kernel = functools.partial(
        _contrastive_kernel, temperature=float(temperature), n_kv=n_kv)

    row_losses = pl.pallas_call(
        kernel,
        out_shape=jax.ShapeDtypeStruct((batch, 1, n), jnp.float32),
        grid_spec=pltpu.PrefetchScalarGridSpec(
            num_scalar_prefetch=0,
            grid=(batch // bb, n_kv),
            in_specs=[
                pl.BlockSpec((bb, dim, n), lambda b, kv: (b, 0, 0)),
                pl.BlockSpec((bb, dim, tkv), lambda b, kv: (b, 0, kv)),
            ],
            out_specs=pl.BlockSpec((bb, 1, n), lambda b, kv: (b, 0, 0)),
            scratch_shapes=[
                pltpu.VMEM((bb, dim, n), jnp.float32),   # qn (scaled by 1/T)
                pltpu.VMEM((bb, 1, n), jnp.float32),     # running max
                pltpu.VMEM((bb, 1, n), jnp.float32),     # running denominator
                pltpu.VMEM((bb, 1, n), jnp.float32),     # positive logits
            ],
        ),
        compiler_params=pltpu.CompilerParams(
            dimension_semantics=("parallel", "arbitrary"),
            vmem_limit_bytes=vmem_limit,
        ),
    )(q, k)

    # CrossEntropyLoss default reduction: mean over the B*N rows.
    return jnp.mean(row_losses)


def _reference_loss(feat_q, feat_k, temperature=0.07):
    """Pure-JAX reference mirroring the PyTorch forward, for validation."""
    batch, dim = feat_q.shape[0], feat_q.shape[1]
    q = feat_q.reshape(batch, dim, -1).transpose(0, 2, 1).astype(jnp.float32)
    k = feat_k.reshape(batch, dim, -1).transpose(0, 2, 1).astype(jnp.float32)
    q = q / jnp.maximum(jnp.sum(jnp.abs(q), axis=-1, keepdims=True), 1e-12)
    k = k / jnp.maximum(jnp.sum(jnp.abs(k), axis=-1, keepdims=True), 1e-12)
    n = q.shape[1]
    l_pos = jnp.sum(q * k, axis=-1).reshape(-1, 1)                 # (B*N, 1)
    l_neg = jnp.einsum("bid,bjd->bij", q, k)                       # (B, N, N)
    eye = jnp.eye(n, dtype=bool)[None]
    l_neg = jnp.where(eye, -jnp.inf, l_neg).reshape(-1, n)         # (B*N, N)
    out = jnp.concatenate([l_pos, l_neg], axis=1) / temperature
    lse = jax.scipy.special.logsumexp(out, axis=1)
    return jnp.mean(lse - out[:, 0])


if __name__ == "__main__":
    # Small shapes consistent with NCHW conv features: (B=2, C=16, H=8, W=8).
    key = jax.random.PRNGKey(0)
    kq, kk = jax.random.split(key)
    feat_q = jax.random.normal(kq, (2, 16, 8, 8), dtype=jnp.float32)
    feat_k = jax.random.normal(kk, (2, 16, 8, 8), dtype=jnp.float32)

    loss = contrastive_loss_sup(feat_q, feat_k)
    jax.block_until_ready(loss)

    ref = _reference_loss(feat_q, feat_k)
    assert jnp.isfinite(loss), loss
    assert jnp.allclose(loss, ref, rtol=1e-4, atol=1e-4), (loss, ref)
    print("KERNEL_OK")
</pallas_src>

<mosaic_0001>
module attributes {stable_mosaic.version = 11 : i64} {
  func.func @_contrastive_kernel(%arg0: i32, %arg1: i32, %arg2: memref<2x16x64xf32, #tpu.memory_space<vmem>>, %arg3: memref<2x16x64xf32, #tpu.memory_space<vmem>>, %arg4: memref<2x1x64xf32, #tpu.memory_space<vmem>>, %arg5: memref<2x16x64xf32, #tpu.memory_space<vmem>>, %arg6: memref<2x1x64xf32, #tpu.memory_space<vmem>>, %arg7: memref<2x1x64xf32, #tpu.memory_space<vmem>>, %arg8: memref<2x1x64xf32, #tpu.memory_space<vmem>>) attributes {dimension_semantics = [#tpu.dimension_semantics<parallel>, #tpu.dimension_semantics<arbitrary>], iteration_bounds = array<i64: 1, 1>, scalar_prefetch = 0 : i64, scratch_operands = 4 : i64, tpu.core_type = #tpu.core_type<tc>, window_params = [{transform_indices = @transform_0, window_bounds = array<i64: 2, 16, 64>}, {transform_indices = @transform_1, window_bounds = array<i64: 2, 16, 64>}, {transform_indices = @transform_2, window_bounds = array<i64: 2, 1, 64>}]} {
    %c0_i32 = arith.constant 0 : i32
    %0 = arith.cmpi eq, %arg1, %c0_i32 : i32
    %1 = arith.extui %0 : i1 to i32
    %c0_i32_0 = arith.constant 0 : i32
    %2 = arith.cmpi ne, %1, %c0_i32_0 : i32
    scf.if %2 {
      %c0_56 = arith.constant 0 : index
      %c0_57 = arith.constant 0 : index
      %c0_58 = arith.constant 0 : index
      %92 = vector.load %arg2[%c0_56, %c0_57, %c0_58] : memref<2x16x64xf32, #tpu.memory_space<vmem>>, vector<1x16x64xf32>
      %93 = vector.shape_cast %92 : vector<1x16x64xf32> to vector<16x64xf32>
      %94 = math.absf %93 : vector<16x64xf32>
      %cst_59 = arith.constant dense<0.000000e+00> : vector<64xf32>
      %95 = vector.multi_reduction <add>, %94, %cst_59 [0] : vector<16x64xf32> to vector<64xf32>
      %96 = vector.shape_cast %95 : vector<64xf32> to vector<1x64xf32>
      %cst_60 = arith.constant 9.99999996E-13 : f32
      %97 = vector.broadcast %cst_60 : f32 to vector<1x64xf32>
      %98 = arith.maximumf %96, %97 : vector<1x64xf32>
      %cst_61 = arith.constant 7.000000e-02 : f32
      %99 = vector.broadcast %cst_61 : f32 to vector<1x64xf32>
      %100 = arith.mulf %99, %98 : vector<1x64xf32>
      %cst_62 = arith.constant 1.000000e+00 : f32
      %101 = vector.broadcast %cst_62 : f32 to vector<1x64xf32>
      %102 = arith.divf %101, %100 : vector<1x64xf32>
      %103 = vector.broadcast %102 : vector<1x64xf32> to vector<16x64xf32>
      %104 = arith.mulf %93, %103 : vector<16x64xf32>
      %c0_63 = arith.constant 0 : index
      %c0_64 = arith.constant 0 : index
      %c0_65 = arith.constant 0 : index
      %105 = vector.load %arg5[%c0_63, %c0_64, %c0_65] : memref<2x16x64xf32, #tpu.memory_space<vmem>>, vector<1x16x64xf32>
      %106 = vector.shape_cast %105 : vector<1x16x64xf32> to vector<16x64xf32>
      %107 = vector.shape_cast %104 : vector<16x64xf32> to vector<1x16x64xf32>
      tpu.vector_store %arg5[%c0_63, %c0_64, %c0_65], %107 {strides = array<i32>} : memref<2x16x64xf32, #tpu.memory_space<vmem>>, vector<1x16x64xf32>,
      %c1_66 = arith.constant 1 : index
      %c0_67 = arith.constant 0 : index
      %c0_68 = arith.constant 0 : index
      %108 = vector.load %arg2[%c1_66, %c0_67, %c0_68] : memref<2x16x64xf32, #tpu.memory_space<vmem>>, vector<1x16x64xf32>
      %109 = vector.shape_cast %108 : vector<1x16x64xf32> to vector<16x64xf32>
      %110 = math.absf %109 : vector<16x64xf32>
      %cst_69 = arith.constant dense<0.000000e+00> : vector<64xf32>
      %111 = vector.multi_reduction <add>, %110, %cst_69 [0] : vector<16x64xf32> to vector<64xf32>
      %112 = vector.shape_cast %111 : vector<64xf32> to vector<1x64xf32>
      %cst_70 = arith.constant 9.99999996E-13 : f32
      %113 = vector.broadcast %cst_70 : f32 to vector<1x64xf32>
      %114 = arith.maximumf %112, %113 : vector<1x64xf32>
      %cst_71 = arith.constant 7.000000e-02 : f32
      %115 = vector.broadcast %cst_71 : f32 to vector<1x64xf32>
      %116 = arith.mulf %115, %114 : vector<1x64xf32>
      %cst_72 = arith.constant 1.000000e+00 : f32
      %117 = vector.broadcast %cst_72 : f32 to vector<1x64xf32>
      %118 = arith.divf %117, %116 : vector<1x64xf32>
      %119 = vector.broadcast %118 : vector<1x64xf32> to vector<16x64xf32>
      %120 = arith.mulf %109, %119 : vector<16x64xf32>
      %c1_73 = arith.constant 1 : index
      %c0_74 = arith.constant 0 : index
      %c0_75 = arith.constant 0 : index
      %121 = vector.load %arg5[%c1_73, %c0_74, %c0_75] : memref<2x16x64xf32, #tpu.memory_space<vmem>>, vector<1x16x64xf32>
      %122 = vector.shape_cast %121 : vector<1x16x64xf32> to vector<16x64xf32>
      %123 = vector.shape_cast %120 : vector<16x64xf32> to vector<1x16x64xf32>
      tpu.vector_store %arg5[%c1_73, %c0_74, %c0_75], %123 {strides = array<i32>} : memref<2x16x64xf32, #tpu.memory_space<vmem>>, vector<1x16x64xf32>,
      %cst_76 = arith.constant 0xFF800000 : f32
      %124 = vector.broadcast %cst_76 : f32 to vector<2x1x64xf32>
      %c0_77 = arith.constant 0 : index
      %c0_78 = arith.constant 0 : index
      %c0_79 = arith.constant 0 : index
      %125 = vector.load %arg6[%c0_77, %c0_78, %c0_79] : memref<2x1x64xf32, #tpu.memory_space<vmem>>, vector<2x1x64xf32>
      tpu.vector_store %arg6[%c0_77, %c0_78, %c0_79], %124 {strides = array<i32>} : memref<2x1x64xf32, #tpu.memory_space<vmem>>, vector<2x1x64xf32>,
      %cst_80 = arith.constant 0.000000e+00 : f32
      %126 = vector.broadcast %cst_80 : f32 to vector<2x1x64xf32>
      %c0_81 = arith.constant 0 : index
      %c0_82 = arith.constant 0 : index
      %c0_83 = arith.constant 0 : index
      %127 = vector.load %arg7[%c0_81, %c0_82, %c0_83] : memref<2x1x64xf32, #tpu.memory_space<vmem>>, vector<2x1x64xf32>
      tpu.vector_store %arg7[%c0_81, %c0_82, %c0_83], %126 {strides = array<i32>} : memref<2x1x64xf32, #tpu.memory_space<vmem>>, vector<2x1x64xf32>,
    } else {
    }
    %c0 = arith.constant 0 : index
    %c0_1 = arith.constant 0 : index
    %c0_2 = arith.constant 0 : index
    %3 = vector.load %arg5[%c0, %c0_1, %c0_2] : memref<2x16x64xf32, #tpu.memory_space<vmem>>, vector<1x16x64xf32>
    %4 = vector.shape_cast %3 : vector<1x16x64xf32> to vector<16x64xf32>
    %c0_3 = arith.constant 0 : index
    %c0_4 = arith.constant 0 : index
    %c0_5 = arith.constant 0 : index
    %5 = vector.load %arg3[%c0_3, %c0_4, %c0_5] : memref<2x16x64xf32, #tpu.memory_space<vmem>>, vector<1x16x64xf32>
    %6 = vector.shape_cast %5 : vector<1x16x64xf32> to vector<16x64xf32>
    %7 = math.absf %6 : vector<16x64xf32>
    %cst = arith.constant dense<0.000000e+00> : vector<64xf32>
    %8 = vector.multi_reduction <add>, %7, %cst [0] : vector<16x64xf32> to vector<64xf32>
    %9 = vector.shape_cast %8 : vector<64xf32> to vector<1x64xf32>
    %cst_6 = arith.constant 9.99999996E-13 : f32
    %10 = vector.broadcast %cst_6 : f32 to vector<1x64xf32>
    %11 = arith.maximumf %9, %10 : vector<1x64xf32>
    %cst_7 = arith.constant 1.000000e+00 : f32
    %12 = vector.broadcast %cst_7 : f32 to vector<1x64xf32>
    %13 = arith.divf %12, %11 : vector<1x64xf32>
    %14 = vector.broadcast %13 : vector<1x64xf32> to vector<16x64xf32>
    %15 = arith.mulf %6, %14 : vector<16x64xf32>
    %16 = arith.mulf %4, %15 : vector<16x64xf32>
    %cst_8 = arith.constant dense<0.000000e+00> : vector<64xf32>
    %17 = vector.multi_reduction <add>, %16, %cst_8 [0] : vector<16x64xf32> to vector<64xf32>
    %18 = vector.shape_cast %17 : vector<64xf32> to vector<1x64xf32>
    %c0_9 = arith.constant 0 : index
    %c0_10 = arith.constant 0 : index
    %c0_11 = arith.constant 0 : index
    %19 = vector.load %arg8[%c0_9, %c0_10, %c0_11] : memref<2x1x64xf32, #tpu.memory_space<vmem>>, vector<1x1x64xf32>
    %20 = vector.shape_cast %19 : vector<1x1x64xf32> to vector<1x64xf32>
    %21 = vector.shape_cast %18 : vector<1x64xf32> to vector<1x1x64xf32>
    tpu.vector_store %arg8[%c0_9, %c0_10, %c0_11], %21 {strides = array<i32>} : memref<2x1x64xf32, #tpu.memory_space<vmem>>, vector<1x1x64xf32>,
    %22 = tpu.transpose %15, [1, 0] : vector<16x64xf32> -> vector<64x16xf32>
    %cst_12 = arith.constant dense<0.000000e+00> : vector<64x64xf32>
    %23 = tpu.matmul %22, %4, %cst_12 {dimension_numbers = #tpu.dot_dimension_numbers<[1], [0], [0], [1], [0, 0, 1, 1], [], []>} : vector<64x16xf32>, vector<16x64xf32>, vector<64x64xf32> -> vector<64x64xf32>
    %c0_13 = arith.constant 0 : index
    %c0_14 = arith.constant 0 : index
    %c0_15 = arith.constant 0 : index
    %24 = vector.load %arg6[%c0_13, %c0_14, %c0_15] : memref<2x1x64xf32, #tpu.memory_space<vmem>>, vector<1x1x64xf32>
    %25 = vector.shape_cast %24 : vector<1x1x64xf32> to vector<1x64xf32>
    %cst_16 = arith.constant dense<0xFF800000> : vector<64xf32>
    %26 = vector.multi_reduction <maximumf>, %23, %cst_16 [0] : vector<64x64xf32> to vector<64xf32>
    %27 = vector.shape_cast %26 : vector<64xf32> to vector<1x64xf32>
    %28 = arith.maximumf %25, %27 : vector<1x64xf32>
    %29 = arith.subf %25, %28 : vector<1x64xf32>
    %30 = math.exp %29 : vector<1x64xf32>
    %c0_17 = arith.constant 0 : index
    %c0_18 = arith.constant 0 : index
    %c0_19 = arith.constant 0 : index
    %31 = vector.load %arg7[%c0_17, %c0_18, %c0_19] : memref<2x1x64xf32, #tpu.memory_space<vmem>>, vector<1x1x64xf32>
    %32 = vector.shape_cast %31 : vector<1x1x64xf32> to vector<1x64xf32>
    %33 = arith.mulf %30, %32 : vector<1x64xf32>
    %34 = vector.broadcast %28 : vector<1x64xf32> to vector<64x64xf32>
    %35 = arith.subf %23, %34 : vector<64x64xf32>
    %36 = math.exp %35 : vector<64x64xf32>
    %cst_20 = arith.constant dense<0.000000e+00> : vector<64xf32>
    %37 = vector.multi_reduction <add>, %36, %cst_20 [0] : vector<64x64xf32> to vector<64xf32>
    %38 = vector.shape_cast %37 : vector<64xf32> to vector<1x64xf32>
    %39 = arith.addf %33, %38 : vector<1x64xf32>
    %c0_21 = arith.constant 0 : index
    %c0_22 = arith.constant 0 : index
    %c0_23 = arith.constant 0 : index
    %40 = vector.load %arg7[%c0_21, %c0_22, %c0_23] : memref<2x1x64xf32, #tpu.memory_space<vmem>>, vector<1x1x64xf32>
    %41 = vector.shape_cast %40 : vector<1x1x64xf32> to vector<1x64xf32>
    %42 = vector.shape_cast %39 : vector<1x64xf32> to vector<1x1x64xf32>
    tpu.vector_store %arg7[%c0_21, %c0_22, %c0_23], %42 {strides = array<i32>} : memref<2x1x64xf32, #tpu.memory_space<vmem>>, vector<1x1x64xf32>,
    %c0_24 = arith.constant 0 : index
    %c0_25 = arith.constant 0 : index
    %c0_26 = arith.constant 0 : index
    %43 = vector.load %arg6[%c0_24, %c0_25, %c0_26] : memref<2x1x64xf32, #tpu.memory_space<vmem>>, vector<1x1x64xf32>
    %44 = vector.shape_cast %43 : vector<1x1x64xf32> to vector<1x64xf32>
    %45 = vector.shape_cast %28 : vector<1x64xf32> to vector<1x1x64xf32>
    tpu.vector_store %arg6[%c0_24, %c0_25, %c0_26], %45 {strides = array<i32>} : memref<2x1x64xf32, #tpu.memory_space<vmem>>, vector<1x1x64xf32>,
    %c1 = arith.constant 1 : index
    %c0_27 = arith.constant 0 : index
    %c0_28 = arith.constant 0 : index
    %46 = vector.load %arg5[%c1, %c0_27, %c0_28] : memref<2x16x64xf32, #tpu.memory_space<vmem>>, vector<1x16x64xf32>
    %47 = vector.shape_cast %46 : vector<1x16x64xf32> to vector<16x64xf32>
    %c1_29 = arith.constant 1 : index
    %c0_30 = arith.constant 0 : index
    %c0_31 = arith.constant 0 : index
    %48 = vector.load %arg3[%c1_29, %c0_30, %c0_31] : memref<2x16x64xf32, #tpu.memory_space<vmem>>, vector<1x16x64xf32>
    %49 = vector.shape_cast %48 : vector<1x16x64xf32> to vector<16x64xf32>
    %50 = math.absf %49 : vector<16x64xf32>
    %cst_32 = arith.constant dense<0.000000e+00> : vector<64xf32>
    %51 = vector.multi_reduction <add>, %50, %cst_32 [0] : vector<16x64xf32> to vector<64xf32>
    %52 = vector.shape_cast %51 : vector<64xf32> to vector<1x64xf32>
    %cst_33 = arith.constant 9.99999996E-13 : f32
    %53 = vector.broadcast %cst_33 : f32 to vector<1x64xf32>
    %54 = arith.maximumf %52, %53 : vector<1x64xf32>
    %cst_34 = arith.constant 1.000000e+00 : f32
    %55 = vector.broadcast %cst_34 : f32 to vector<1x64xf32>
    %56 = arith.divf %55, %54 : vector<1x64xf32>
    %57 = vector.broadcast %56 : vector<1x64xf32> to vector<16x64xf32>
    %58 = arith.mulf %49, %57 : vector<16x64xf32>
    %59 = arith.mulf %47, %58 : vector<16x64xf32>
    %cst_35 = arith.constant dense<0.000000e+00> : vector<64xf32>
    %60 = vector.multi_reduction <add>, %59, %cst_35 [0] : vector<16x64xf32> to vector<64xf32>
    %61 = vector.shape_cast %60 : vector<64xf32> to vector<1x64xf32>
    %c1_36 = arith.constant 1 : index
    %c0_37 = arith.constant 0 : index
    %c0_38 = arith.constant 0 : index
    %62 = vector.load %arg8[%c1_36, %c0_37, %c0_38] : memref<2x1x64xf32, #tpu.memory_space<vmem>>, vector<1x1x64xf32>
    %63 = vector.shape_cast %62 : vector<1x1x64xf32> to vector<1x64xf32>
    %64 = vector.shape_cast %61 : vector<1x64xf32> to vector<1x1x64xf32>
    tpu.vector_store %arg8[%c1_36, %c0_37, %c0_38], %64 {strides = array<i32>} : memref<2x1x64xf32, #tpu.memory_space<vmem>>, vector<1x1x64xf32>,
    %65 = tpu.transpose %58, [1, 0] : vector<16x64xf32> -> vector<64x16xf32>
    %cst_39 = arith.constant dense<0.000000e+00> : vector<64x64xf32>
    %66 = tpu.matmul %65, %47, %cst_39 {dimension_numbers = #tpu.dot_dimension_numbers<[1], [0], [0], [1], [0, 0, 1, 1], [], []>} : vector<64x16xf32>, vector<16x64xf32>, vector<64x64xf32> -> vector<64x64xf32>
    %c1_40 = arith.constant 1 : index
    %c0_41 = arith.constant 0 : index
    %c0_42 = arith.constant 0 : index
    %67 = vector.load %arg6[%c1_40, %c0_41, %c0_42] : memref<2x1x64xf32, #tpu.memory_space<vmem>>, vector<1x1x64xf32>
    %68 = vector.shape_cast %67 : vector<1x1x64xf32> to vector<1x64xf32>
    %cst_43 = arith.constant dense<0xFF800000> : vector<64xf32>
    %69 = vector.multi_reduction <maximumf>, %66, %cst_43 [0] : vector<64x64xf32> to vector<64xf32>
    %70 = vector.shape_cast %69 : vector<64xf32> to vector<1x64xf32>
    %71 = arith.maximumf %68, %70 : vector<1x64xf32>
    %72 = arith.subf %68, %71 : vector<1x64xf32>
    %73 = math.exp %72 : vector<1x64xf32>
    %c1_44 = arith.constant 1 : index
    %c0_45 = arith.constant 0 : index
    %c0_46 = arith.constant 0 : index
    %74 = vector.load %arg7[%c1_44, %c0_45, %c0_46] : memref<2x1x64xf32, #tpu.memory_space<vmem>>, vector<1x1x64xf32>
    %75 = vector.shape_cast %74 : vector<1x1x64xf32> to vector<1x64xf32>
    %76 = arith.mulf %73, %75 : vector<1x64xf32>
    %77 = vector.broadcast %71 : vector<1x64xf32> to vector<64x64xf32>
    %78 = arith.subf %66, %77 : vector<64x64xf32>
    %79 = math.exp %78 : vector<64x64xf32>
    %cst_47 = arith.constant dense<0.000000e+00> : vector<64xf32>
    %80 = vector.multi_reduction <add>, %79, %cst_47 [0] : vector<64x64xf32> to vector<64xf32>
    %81 = vector.shape_cast %80 : vector<64xf32> to vector<1x64xf32>
    %82 = arith.addf %76, %81 : vector<1x64xf32>
    %c1_48 = arith.constant 1 : index
    %c0_49 = arith.constant 0 : index
    %c0_50 = arith.constant 0 : index
    %83 = vector.load %arg7[%c1_48, %c0_49, %c0_50] : memref<2x1x64xf32, #tpu.memory_space<vmem>>, vector<1x1x64xf32>
    %84 = vector.shape_cast %83 : vector<1x1x64xf32> to vector<1x64xf32>
    %85 = vector.shape_cast %82 : vector<1x64xf32> to vector<1x1x64xf32>
    tpu.vector_store %arg7[%c1_48, %c0_49, %c0_50], %85 {strides = array<i32>} : memref<2x1x64xf32, #tpu.memory_space<vmem>>, vector<1x1x64xf32>,
    %c1_51 = arith.constant 1 : index
    %c0_52 = arith.constant 0 : index
    %c0_53 = arith.constant 0 : index
    %86 = vector.load %arg6[%c1_51, %c0_52, %c0_53] : memref<2x1x64xf32, #tpu.memory_space<vmem>>, vector<1x1x64xf32>
    %87 = vector.shape_cast %86 : vector<1x1x64xf32> to vector<1x64xf32>
    %88 = vector.shape_cast %71 : vector<1x64xf32> to vector<1x1x64xf32>
    tpu.vector_store %arg6[%c1_51, %c0_52, %c0_53], %88 {strides = array<i32>} : memref<2x1x64xf32, #tpu.memory_space<vmem>>, vector<1x1x64xf32>,
    %c0_i32_54 = arith.constant 0 : i32
    %89 = arith.cmpi eq, %arg1, %c0_i32_54 : i32
    %90 = arith.extui %89 : i1 to i32
    %c0_i32_55 = arith.constant 0 : i32
    %91 = arith.cmpi ne, %90, %c0_i32_55 : i32
    scf.if %91 {
      %c0_56 = arith.constant 0 : index
      %c0_57 = arith.constant 0 : index
      %c0_58 = arith.constant 0 : index
      %92 = vector.load %arg6[%c0_56, %c0_57, %c0_58] : memref<2x1x64xf32, #tpu.memory_space<vmem>>, vector<2x1x64xf32>
      %c0_59 = arith.constant 0 : index
      %c0_60 = arith.constant 0 : index
      %c0_61 = arith.constant 0 : index
      %93 = vector.load %arg7[%c0_59, %c0_60, %c0_61] : memref<2x1x64xf32, #tpu.memory_space<vmem>>, vector<2x1x64xf32>
      %94 = math.log %93 : vector<2x1x64xf32>
      %95 = arith.addf %92, %94 : vector<2x1x64xf32>
      %c0_62 = arith.constant 0 : index
      %c0_63 = arith.constant 0 : index
      %c0_64 = arith.constant 0 : index
      %96 = vector.load %arg8[%c0_62, %c0_63, %c0_64] : memref<2x1x64xf32, #tpu.memory_space<vmem>>, vector<2x1x64xf32>
      %97 = arith.subf %95, %96 : vector<2x1x64xf32>
      %c0_65 = arith.constant 0 : index
      %c0_66 = arith.constant 0 : index
      %c0_67 = arith.constant 0 : index
      %98 = vector.load %arg4[%c0_65, %c0_66, %c0_67] : memref<2x1x64xf32, #tpu.memory_space<vmem>>, vector<2x1x64xf32>
      tpu.vector_store %arg4[%c0_65, %c0_66, %c0_67], %97 {strides = array<i32>} : memref<2x1x64xf32, #tpu.memory_space<vmem>>, vector<2x1x64xf32>,
    } else {
    }
    return
  }
  func.func @transform_0(%arg0: i32, %arg1: i32) -> (i32, i32, i32) {
    %c0_i32 = arith.constant 0 : i32
    %c0_i32_0 = arith.constant 0 : i32
    %c0_i32_1 = arith.constant 0 : i32
    return %arg0, %c0_i32, %c0_i32_0 : i32, i32, i32
  }
  func.func @transform_1(%arg0: i32, %arg1: i32) -> (i32, i32, i32) {
    %c0_i32 = arith.constant 0 : i32
    %c0_i32_0 = arith.constant 0 : i32
    return %arg0, %c0_i32, %arg1 : i32, i32, i32
  }
  func.func @transform_2(%arg0: i32, %arg1: i32) -> (i32, i32, i32) {
    %c0_i32 = arith.constant 0 : i32
    %c0_i32_0 = arith.constant 0 : i32
    %c0_i32_1 = arith.constant 0 : i32
    return %arg0, %c0_i32, %c0_i32_0 : i32, i32, i32
  }
}

</mosaic_0001>

<llo_original>
// kernel: tpu_custom_call.1
$region0: #{tpu_custom_call.1}
  #allocation0 [shape = 'u32[]', space=smem, size = 0x4, offset = 0x4, fixed_abs, tag = 'smem constant byte address 0x4 - core index']
  #allocation1 [shape = 'u32[144,128]{1,0:T(1,128)}', space=vmem, size = 0x12000, scoped, tag = 'internal scratch']
  #allocation2 [shape = 'f32[2,16,64]{2,1,0:T(8,128)}', space=vmem, size = 0x4000, scoped, tag = 'scratch operand']
  #allocation3 [shape = 'f32[2,1,64]{2,1,0:T(1,128)}', space=vmem, size = 0x400, scoped, tag = 'scratch operand']
  #allocation4 [shape = 'f32[2,1,64]{2,1,0:T(1,128)}', space=vmem, size = 0x400, scoped, tag = 'scratch operand']
  #allocation5 [shape = 'f32[2,1,64]{2,1,0:T(1,128)}', space=vmem, size = 0x400, scoped, tag = 'scratch operand']
  %s0 = inlined_call_operand.hbm [shape: f32[2,16,64], index: 0, kind: input, shape index: {}]
  %s1 = inlined_call_operand.hbm [shape: f32[2,16,64], index: 1, kind: input, shape index: {}]
  %s2 = inlined_call_operand.hbm [shape: f32[2,1,64], index: 2, kind: output, shape index: {}]
  %s3 = sld [smem:[#allocation0]]
  $region34: #{tpu_custom_call.1} parent=0
    _
  %s5 = ssub.s32 1, %s3
  %s6 = scalar_select 0, %s5, %s3
  $region1: #{tpu_custom_call.1} parent=0
    #allocation6 [shape = 'u8[16384]{0}', space=vmem, size = 0x4000, scoped, tag = 'input window, operand 0, single buffered']
    #allocation7 [shape = 's32[1]{0}', space=sflag, size = 0x4, scoped, tag = 'scoped memory for tpu_custom_call.1']
    #allocation8 [shape = 's32[1]{0}', space=sflag, size = 0x4, scoped, tag = 'scoped memory for tpu_custom_call.1']
    #allocation9 [shape = 'u8[16384]{0}', space=vmem, size = 0x4000, scoped, tag = 'input window, operand 1, single buffered']
    #allocation10 [shape = 's32[1]{0}', space=sflag, size = 0x4, scoped, tag = 'scoped memory for tpu_custom_call.1']
    #allocation11 [shape = 'u8[1024]{0}', space=vmem, size = 0x400, scoped, tag = 'output window, operand 0, single buffered']
    %7 = vsyncpa [#allocation7], 0
    %8 = vsyncpa [#allocation10], 0
    %9 = vsyncpa [#allocation8], 0
    // Predicated region
    $region2: #{tpu_custom_call.1} parent=1 // pred_check
      _
    $region3: #{tpu_custom_call.1} parent=1 // pred_check_branch
      %11 = sbr.rel (0) target = $region5
    $region4: #{tpu_custom_call.1} parent=1 // pred_region
      %s13 = ssub.s32 512, 512
      %14 = vsyncadd [#allocation7], %s13
      %s15 = sshll.u32 [#allocation6], 4
      %s16 = int_to_ptr.vmem [resolvable:$true] %s15
      %21 = dma.hbm_to_vmem [thread:$0]  %s0, 512, %s16, [#allocation7], 128, 128, 8
    $region5: #{tpu_custom_call.1} parent=1 // pred_fallthru
      _
    // Predicated region
    $region6: #{tpu_custom_call.1} parent=1 // pred_check
      _
    $region7: #{tpu_custom_call.1} parent=1 // pred_check_branch
      %23 = sbr.rel (0) target = $region9
    $region8: #{tpu_custom_call.1} parent=1 // pred_region
      %s25 = ssub.s32 512, 512
      %26 = vsyncadd [#allocation10], %s25
      %s27 = sshll.u32 [#allocation9], 4
      %s28 = int_to_ptr.vmem [resolvable:$true] %s27
      %33 = dma.hbm_to_vmem [thread:$0]  %s1, 512, %s28, [#allocation10], 128, 128, 8
    $region9: #{tpu_custom_call.1} parent=1 // pred_fallthru
      _
    // Predicated region
    $region10: #{tpu_custom_call.1} parent=1 // pred_check
      _
    $region11: #{tpu_custom_call.1} parent=1 // pred_check_branch
      %35 = sbr.rel (0) target = $region13
    $region12: #{tpu_custom_call.1} parent=1 // pred_region
      %36 = dma.done [#allocation7], 512
    $region13: #{tpu_custom_call.1} parent=1 // pred_fallthru
      _
    // Predicated region
    $region14: #{tpu_custom_call.1} parent=1 // pred_check
      _
    $region15: #{tpu_custom_call.1} parent=1 // pred_check_branch
      %38 = sbr.rel (0) target = $region17
    $region16: #{tpu_custom_call.1} parent=1 // pred_region
      %39 = dma.done [#allocation10], 512
    $region17: #{tpu_custom_call.1} parent=1 // pred_fallthru
      _
    %p40 = scmp.eq.s32.totalorder 0, 0
    // Predicated region
    $region18: #{tpu_custom_call.1} parent=1 // pred_check
      %p41 = pneg %p40
    $region19: #{tpu_custom_call.1} parent=1 // pred_check_branch
      %43 = sbr.rel (%p41) target = $region21
    $region20: #{tpu_custom_call.1} parent=1 // pred_region
      %v44 = vld [vmem:[#allocation6] sm:$0xff]
      %v45 = vld [vmem:[#allocation6 + $0x8] sm:$0xff]
      %v46 = vand.u32 2147483647, %v44
      %v47 = vand.u32 2147483647, %v45
      %vm48 = vcmask 523264
      %v49 = vsel %vm48, %v46, 0.0
      %v50 = vsel %vm48, %v47, 0.0
      %v51 = vadd.f32 %v49, %v50
      %v52 = vrot.slane %v51, 4
      %v53 = vadd.f32 %v51, %v52
      %v54 = vrot.slane %v53, 2
      %v55 = vadd.f32 %v53, %v54
      %v56 = vrot.slane %v55, 1
      %v57 = vadd.f32 %v55, %v56
      %v58 = vmax.f32 %v57, 1e-12
      %v59 = vmul.f32 %v58, 0.07
      %v60 = vrcp.pop %v59
      %v61 = vmul.f32 1.0, %v60
      %v62 = vmul.f32 %v44, %v61
      %v63 = vmul.f32 %v45, %v61
      %64 = vst.msk [vmem:[#allocation2] sm:$0xff] %vm48, %v62
      %65 = vst.msk [vmem:[#allocation2 + $0x8] sm:$0xff] %vm48, %v63
      %s66 = scalar_lea.vmem [#allocation6], 16
      %v67 = vld [vmem:[%s66] sm:$0xff]
      %v68 = vld [vmem:[%s66 + $0x8] sm:$0xff]
      %v69 = vand.u32 2147483647, %v67
      %v70 = vand.u32 2147483647, %v68
      %v71 = vsel %vm48, %v69, 0.0
      %v72 = vsel %vm48, %v70, 0.0
      %v73 = vadd.f32 %v71, %v72
      %v74 = vrot.slane %v73, 4
      %v75 = vadd.f32 %v73, %v74
      %v76 = vrot.slane %v75, 2
      %v77 = vadd.f32 %v75, %v76
      %v78 = vrot.slane %v77, 1
      %v79 = vadd.f32 %v77, %v78
      %v80 = vmax.f32 %v79, 1e-12
      %v81 = vmul.f32 %v80, 0.07
      %v82 = vrcp.pop %v81
      %v83 = vmul.f32 1.0, %v82
      %v84 = vmul.f32 %v67, %v83
      %v85 = vmul.f32 %v68, %v83
      %s86 = scalar_lea.vmem [#allocation2], 16
      %87 = vst.msk [vmem:[%s86] sm:$0xff] %vm48, %v84
      %88 = vst.msk [vmem:[%s86 + $0x8] sm:$0xff] %vm48, %v85
      %vm89 = vcmask 516096
      %90 = vst.msk [vmem:[#allocation3] sm:$0x1] %vm89, -inf
      %91 = vst.msk [vmem:[#allocation3 + $0x1] sm:$0x1] %vm89, -inf
      %92 = vst.msk [vmem:[#allocation4] sm:$0x1] %vm89, 0.0
      %93 = vst.msk [vmem:[#allocation4 + $0x1] sm:$0x1] %vm89, 0.0
    $region21: #{tpu_custom_call.1} parent=1 // pred_fallthru
      _
    %v94 = vld [vmem:[#allocation2] sm:$0xff]
    %v95 = vld [vmem:[#allocation2 + $0x8] sm:$0xff]
    %v96 = vld [vmem:[#allocation9] sm:$0xff]
    %v97 = vld [vmem:[#allocation9 + $0x8] sm:$0xff]
    %v98 = vand.u32 2147483647, %v96
    %v99 = vand.u32 2147483647, %v97
    %vm100 = vcmask 523264
    %v101 = vsel %vm100, %v98, 0.0
    %v102 = vsel %vm100, %v99, 0.0
    %v103 = vadd.f32 %v101, %v102
    %v104 = vrot.slane %v103, 4
    %v105 = vadd.f32 %v103, %v104
    %v106 = vrot.slane %v105, 2
    %v107 = vadd.f32 %v105, %v106
    %v108 = vrot.slane %v107, 1
    %v109 = vadd.f32 %v107, %v108
    %v110 = vmax.f32 %v109, 1e-12
    %v111 = vrcp.pop %v110
    %v112 = vmul.f32 1.0, %v111
    %v113 = vmul.f32 %v96, %v112
    %v114 = vmul.f32 %v97, %v112
    %v115 = vmul.f32 %v94, %v113
    %v116 = vmul.f32 %v95, %v114
    %v117 = vsel %vm100, %v115, 0.0
    %v118 = vsel %vm100, %v116, 0.0
    %v119 = vadd.f32 %v117, %v118
    %v120 = vrot.slane %v119, 4
    %v121 = vadd.f32 %v119, %v120
    %v122 = vrot.slane %v121, 2
    %v123 = vadd.f32 %v121, %v122
    %v124 = vrot.slane %v123, 1
    %v125 = vadd.f32 %v123, %v124
    %vm126 = vcmask 516096
    %127 = vst.msk [vmem:[#allocation5] sm:$0x1] %vm126, %v125
    %128 = vxpose.xlu0.b32.start [1/16] %v113, 128
    %129 = vxpose.xlu0.b32.cont [2/16] %v114, 128
    %130 = vxpose.xlu0.b32.cont [3/16] 0.0, 128
    %131 = vxpose.xlu0.b32.cont [4/16] 0.0, 128
    %132 = vxpose.xlu0.b32.cont [5/16] 0.0, 128
    %133 = vxpose.xlu0.b32.cont [6/16] 0.0, 128
    %134 = vxpose.xlu0.b32.cont [7/16] 0.0, 128
    %135 = vxpose.xlu0.b32.cont [8/16] 0.0, 128
    %136 = vxpose.xlu0.b32.cont [9/16] 0.0, 128
    %137 = vxpose.xlu0.b32.cont [10/16] 0.0, 128
    %138 = vxpose.xlu0.b32.cont [11/16] 0.0, 128
    %139 = vxpose.xlu0.b32.cont [12/16] 0.0, 128
    %140 = vxpose.xlu0.b32.cont [13/16] 0.0, 128
    %141 = vxpose.xlu0.b32.cont [14/16] 0.0, 128
    %142 = vxpose.xlu0.b32.cont [15/16] 0.0, 128
    %143 = vxpose.xlu0.b32.end [16/16] 0.0, 128
    %v144 = vpop.trf.xlu0
    %v145 = vpop.trf.xlu0
    %v146 = vpop.trf.xlu0
    %v147 = vpop.trf.xlu0
    %v148 = vpop.trf.xlu0
    %v149 = vpop.trf.xlu0
    %v150 = vpop.trf.xlu0
    %v151 = vpop.trf.xlu0
    %v152 = vpop.trf.xlu0
    %v153 = vpop.trf.xlu0
    %v154 = vpop.trf.xlu0
    %v155 = vpop.trf.xlu0
    %v156 = vpop.trf.xlu0
    %v157 = vpop.trf.xlu0
    %v158 = vpop.trf.xlu0
    %v159 = vpop.trf.xlu0
    %vm160 = vcmask 130048
    %v162 = vsel %vm160, %v144, 0
    %v165 = vsel %vm160, %v145, 0
    %v168 = vsel %vm160, %v146, 0
    %v171 = vsel %vm160, %v147, 0
    %v174 = vsel %vm160, %v148, 0
    %v177 = vsel %vm160, %v149, 0
    %v180 = vsel %vm160, %v150, 0
    %v183 = vsel %vm160, %v151, 0
    %185 = vmatprep.subr.mxu0 0.0
    %186 = vmatpush1.msra.mxu0 %v94
    %187 = vmatprep.subr.mxu0 0.0
    %188 = vmatpush1.msra.mxu0 %v95
    %189 = vmatprep.subr.mxu0 0.0
    %190 = vmatpush1.msra.mxu0 0.0
    %191 = vmatprep.subr.mxu0 0.0
    %192 = vmatpush1.msra.mxu0 0.0
    %193 = vmatprep.subr.mxu0 0.0
    %194 = vmatpush1.msra.mxu0 0.0
    %195 = vmatprep.subr.mxu0 0.0
    %196 = vmatpush1.msra.mxu0 0.0
    %197 = vmatprep.subr.mxu0 0.0
    %198 = vmatpush1.msra.mxu0 0.0
    %199 = vmatprep.subr.mxu0 0.0
    %200 = vmatpush1.msra.mxu0 0.0
    %201 = vmatprep.subr.mxu0 0.0
    %202 = vmatpush1.msra.mxu0 0.0
    %203 = vmatprep.subr.mxu0 0.0
    %204 = vmatpush1.msra.mxu0 0.0
    %205 = vmatprep.subr.mxu0 0.0
    %206 = vmatpush1.msra.mxu0 0.0
    %207 = vmatprep.subr.mxu0 0.0
    %208 = vmatpush1.msra.mxu0 0.0
    %209 = vmatprep.subr.mxu0 0.0
    %210 = vmatpush1.msra.mxu0 0.0
    %211 = vmatprep.subr.mxu0 0.0
    %212 = vmatpush1.msra.mxu0 0.0
    %213 = vmatprep.subr.mxu0 0.0
    %214 = vmatpush1.msra.mxu0 0.0
    %215 = vmatprep.subr.mxu0 0.0
    %216 = vmatpush1.msra.mxu0 0.0
    %217 = vmatprep.subr.mxu0 0.0
    %218 = vmatpush1.msra.mxu0 0.0
    %219 = vmatprep.subr.mxu0 0.0
    %220 = vmatpush1.msra.mxu0 0.0
    %221 = vmatprep.subr.mxu0 0.0
    %222 = vmatpush1.msra.mxu0 0.0
    %223 = vmatprep.subr.mxu0 0.0
    %224 = vmatpush1.msra.mxu0 0.0
    %225 = vmatprep.subr.mxu0 0.0
    %226 = vmatpush1.msra.mxu0 0.0
    %227 = vmatprep.subr.mxu0 0.0
    %228 = vmatpush1.msra.mxu0 0.0
    %229 = vmatprep.subr.mxu0 0.0
    %230 = vmatpush1.msra.mxu0 0.0
    %231 = vmatprep.subr.mxu0 0.0
    %232 = vmatpush1.msra.mxu0 0.0
    %233 = vmatprep.subr.mxu0 0.0
    %234 = vmatpush1.msra.mxu0 0.0
    %235 = vmatprep.subr.mxu0 0.0
    %236 = vmatpush1.msra.mxu0 0.0
    %237 = vmatprep.subr.mxu0 0.0
    %238 = vmatpush1.msra.mxu0 0.0
    %239 = vmatprep.subr.mxu0 0.0
    %240 = vmatpush1.msra.mxu0 0.0
    %241 = vmatprep.subr.mxu0 0.0
    %242 = vmatpush1.msra.mxu0 0.0
    %243 = vmatprep.subr.mxu0 0.0
    %244 = vmatpush1.msra.mxu0 0.0
    %245 = vmatprep.subr.mxu0 0.0
    %246 = vmatpush1.msra.mxu0 0.0
    %247 = vmatprep.subr.mxu0 0.0
    %248 = vmatpush1.msra.mxu0 0.0
    %249 = vmatprep.mubr.f32.mxu0 0.0
    %250 = vmatmul.mubr.f32.gmra.mrb[0].mxu0 %v162
    %v251 = vpop.f32.mrb[0].mxu0
    %v252 = vadd.f32 0.0, %v251
    %v253 = vpop.f32.mrb[0].mxu0
    %254 = vmatprep.mubr.f32.mxu0 0.0
    %255 = vmatmul.mubr.f32.gmra.mrb[0].mxu0 %v165
    %v256 = vpop.f32.mrb[0].mxu0
    %v257 = vadd.f32 0.0, %v256
    %v258 = vpop.f32.mrb[0].mxu0
    %259 = vmatprep.mubr.f32.mxu0 0.0
    %260 = vmatmul.mubr.f32.gmra.mrb[0].mxu0 %v168
    %v261 = vpop.f32.mrb[0].mxu0
    %v262 = vadd.f32 0.0, %v261
    %v263 = vpop.f32.mrb[0].mxu0
    %264 = vmatprep.mubr.f32.mxu0 0.0
    %265 = vmatmul.mubr.f32.gmra.mrb[0].mxu0 %v171
    %v266 = vpop.f32.mrb[0].mxu0
    %v267 = vadd.f32 0.0, %v266
    %v268 = vpop.f32.mrb[0].mxu0
    %269 = vmatprep.mubr.f32.mxu0 0.0
    %270 = vmatmul.mubr.f32.gmra.mrb[0].mxu0 %v174
    %v271 = vpop.f32.mrb[0].mxu0
    %v272 = vadd.f32 0.0, %v271
    %v273 = vpop.f32.mrb[0].mxu0
    %274 = vmatprep.mubr.f32.mxu0 0.0
    %275 = vmatmul.mubr.f32.gmra.mrb[0].mxu0 %v177
    %v276 = vpop.f32.mrb[0].mxu0
    %v277 = vadd.f32 0.0, %v276
    %v278 = vpop.f32.mrb[0].mxu0
    %279 = vmatprep.mubr.f32.mxu0 0.0
    %280 = vmatmul.mubr.f32.gmra.mrb[0].mxu0 %v180
    %v281 = vpop.f32.mrb[0].mxu0
    %v282 = vadd.f32 0.0, %v281
    %v283 = vpop.f32.mrb[0].mxu0
    %284 = vmatprep.mubr.f32.mxu0 0.0
    %285 = vmatmul.mubr.f32.gmra.mrb[0].mxu0 %v183
    %v286 = vpop.f32.mrb[0].mxu0
    %v287 = vadd.f32 0.0, %v286
    %v288 = vpop.f32.mrb[0].mxu0
    %289 = vdwg.mxu0
    %v290 = vld [vmem:[#allocation3] sm:$0x1]
    %v291 = vsel %vm100, %v252, -inf
    %v292 = vsel %vm100, %v257, -inf
    %v293 = vsel %vm100, %v262, -inf
    %v294 = vsel %vm100, %v267, -inf
    %v295 = vsel %vm100, %v272, -inf
    %v296 = vmax.f32 %v291, %v295
    %v297 = vsel %vm100, %v277, -inf
    %v298 = vmax.f32 %v292, %v297
    %v299 = vsel %vm100, %v282, -inf
    %v300 = vmax.f32 %v293, %v299
    %v301 = vsel %vm100, %v287, -inf
    %v302 = vmax.f32 %v294, %v301
    %v303 = vmax.f32 %v296, %v298
    %v304 = vmax.f32 %v300, %v302
    %v305 = vmax.f32 %v303, %v304
    %v306 = vrot.slane %v305, 4
    %v307 = vmax.f32 %v305, %v306
    %v308 = vrot.slane %v307, 2
    %v309 = vmax.f32 %v307, %v308
    %v310 = vrot.slane %v309, 1
    %v311 = vmax.f32 %v309, %v310
    %v312 = vmax.f32 %v290, %v311
    %v313 = vsub.f32 %v290, %v312
    %v314 = vmul.f32 %v313, 1.442695
    %v315 = vpow.pop %v314
    %v316 = vld [vmem:[#allocation4] sm:$0x1]
    %v317 = vmul.f32 %v315, %v316
    %v319 = vlaneseq
    %v320 = vshrl.u32 %v319, 7
    %v321 = vsub.s32 0, %v320
    %v322 = vrot.slane %v312, %v321
    %v324 = vsub.f32 %v252, %v322
    %v325 = vsub.f32 %v257, %v322
    %v326 = vsub.f32 %v262, %v322
    %v327 = vsub.f32 %v267, %v322
    %v328 = vsub.f32 %v272, %v322
    %v329 = vsub.f32 %v277, %v322
    %v330 = vsub.f32 %v282, %v322
    %v331 = vsub.f32 %v287, %v322
    %v332 = vmul.f32 %v324, 1.442695
    %v333 = vpow.pop %v332
    %v334 = vmul.f32 %v325, 1.442695
    %v335 = vpow.pop %v334
    %v336 = vmul.f32 %v326, 1.442695
    %v337 = vpow.pop %v336
    %v338 = vmul.f32 %v327, 1.442695
    %v339 = vpow.pop %v338
    %v340 = vmul.f32 %v328, 1.442695
    %v341 = vpow.pop %v340
    %v342 = vmul.f32 %v329, 1.442695
    %v343 = vpow.pop %v342
    %v344 = vmul.f32 %v330, 1.442695
    %v345 = vpow.pop %v344
    %v346 = vmul.f32 %v331, 1.442695
    %v347 = vpow.pop %v346
    %v348 = vsel %vm100, %v333, 0.0
    %v349 = vsel %vm100, %v335, 0.0
    %v350 = vadd.f32 %v348, %v349
    %v351 = vsel %vm100, %v337, 0.0
    %v352 = vadd.f32 %v350, %v351
    %v353 = vsel %vm100, %v339, 0.0
    %v354 = vadd.f32 %v352, %v353
    %v355 = vsel %vm100, %v341, 0.0
    %v356 = vadd.f32 %v354, %v355
    %v357 = vsel %vm100, %v343, 0.0
    %v358 = vadd.f32 %v356, %v357
    %v359 = vsel %vm100, %v345, 0.0
    %v360 = vadd.f32 %v358, %v359
    %v361 = vsel %vm100, %v347, 0.0
    %v362 = vadd.f32 %v360, %v361
    %v363 = vrot.slane %v362, 4
    %v364 = vadd.f32 %v362, %v363
    %v365 = vrot.slane %v364, 2
    %v366 = vadd.f32 %v364, %v365
    %v367 = vrot.slane %v366, 1
    %v368 = vadd.f32 %v366, %v367
    %v369 = vadd.f32 %v317, %v368
    %370 = vst.msk [vmem:[#allocation4] sm:$0x1] %vm126, %v369
    %371 = vst.msk [vmem:[#allocation3] sm:$0x1] %vm126, %v312
    %s372 = scalar_lea.vmem [#allocation2], 16
    %v373 = vld [vmem:[%s372] sm:$0xff]
    %v374 = vld [vmem:[%s372 + $0x8] sm:$0xff]
    %s375 = scalar_lea.vmem [#allocation9], 16
    %v376 = vld [vmem:[%s375] sm:$0xff]
    %v377 = vld [vmem:[%s375 + $0x8] sm:$0xff]
    %v378 = vand.u32 2147483647, %v376
    %v379 = vand.u32 2147483647, %v377
    %v380 = vsel %vm100, %v378, 0.0
    %v381 = vsel %vm100, %v379, 0.0
    %v382 = vadd.f32 %v380, %v381
    %v383 = vrot.slane %v382, 4
    %v384 = vadd.f32 %v382, %v383
    %v385 = vrot.slane %v384, 2
    %v386 = vadd.f32 %v384, %v385
    %v387 = vrot.slane %v386, 1
    %v388 = vadd.f32 %v386, %v387
    %v389 = vmax.f32 %v388, 1e-12
    %v390 = vrcp.pop %v389
    %v391 = vmul.f32 1.0, %v390
    %v392 = vmul.f32 %v376, %v391
    %v393 = vmul.f32 %v377, %v391
    %v394 = vmul.f32 %v373, %v392
    %v395 = vmul.f32 %v374, %v393
    %v396 = vsel %vm100, %v394, 0.0
    %v397 = vsel %vm100, %v395, 0.0
    %v398 = vadd.f32 %v396, %v397
    %v399 = vrot.slane %v398, 4
    %v400 = vadd.f32 %v398, %v399
    %v401 = vrot.slane %v400, 2
    %v402 = vadd.f32 %v400, %v401
    %v403 = vrot.slane %v402, 1
    %v404 = vadd.f32 %v402, %v403
    %s405 = scalar_lea.vmem [#allocation5], 1
    %406 = vst.msk [vmem:[%s405] sm:$0x1] %vm126, %v404
    %407 = vxpose.xlu0.b32.start [1/16] %v392, 128
    %408 = vxpose.xlu0.b32.cont [2/16] %v393, 128
    %409 = vxpose.xlu0.b32.cont [3/16] 0.0, 128
    %410 = vxpose.xlu0.b32.cont [4/16] 0.0, 128
    %411 = vxpose.xlu0.b32.cont [5/16] 0.0, 128
    %412 = vxpose.xlu0.b32.cont [6/16] 0.0, 128
    %413 = vxpose.xlu0.b32.cont [7/16] 0.0, 128
    %414 = vxpose.xlu0.b32.cont [8/16] 0.0, 128
    %415 = vxpose.xlu0.b32.cont [9/16] 0.0, 128
    %416 = vxpose.xlu0.b32.cont [10/16] 0.0, 128
    %417 = vxpose.xlu0.b32.cont [11/16] 0.0, 128
    %418 = vxpose.xlu0.b32.cont [12/16] 0.0, 128
    %419 = vxpose.xlu0.b32.cont [13/16] 0.0, 128
    %420 = vxpose.xlu0.b32.cont [14/16] 0.0, 128
    %421 = vxpose.xlu0.b32.cont [15/16] 0.0, 128
    %422 = vxpose.xlu0.b32.end [16/16] 0.0, 128
    %v423 = vpop.trf.xlu0
    %v424 = vpop.trf.xlu0
    %v425 = vpop.trf.xlu0
    %v426 = vpop.trf.xlu0
    %v427 = vpop.trf.xlu0
    %v428 = vpop.trf.xlu0
    %v429 = vpop.trf.xlu0
    %v430 = vpop.trf.xlu0
    %v431 = vpop.trf.xlu0
    %v432 = vpop.trf.xlu0
    %v433 = vpop.trf.xlu0
    %v434 = vpop.trf.xlu0
    %v435 = vpop.trf.xlu0
    %v436 = vpop.trf.xlu0
    %v437 = vpop.trf.xlu0
    %v438 = vpop.trf.xlu0
    %v440 = vsel %vm160, %v423, 0
    %v443 = vsel %vm160, %v424, 0
    %v446 = vsel %vm160, %v425, 0
    %v449 = vsel %vm160, %v426, 0
    %v452 = vsel %vm160, %v427, 0
    %v455 = vsel %vm160, %v428, 0
    %v458 = vsel %vm160, %v429, 0
    %v461 = vsel %vm160, %v430, 0
    %463 = vmatprep.subr.mxu0 0.0
    %464 = vmatpush1.msra.mxu0 %v373
    %465 = vmatprep.subr.mxu0 0.0
    %466 = vmatpush1.msra.mxu0 %v374
    %467 = vmatprep.subr.mxu0 0.0
    %468 = vmatpush1.msra.mxu0 0.0
    %469 = vmatprep.subr.mxu0 0.0
    %470 = vmatpush1.msra.mxu0 0.0
    %471 = vmatprep.subr.mxu0 0.0
    %472 = vmatpush1.msra.mxu0 0.0
    %473 = vmatprep.subr.mxu0 0.0
    %474 = vmatpush1.msra.mxu0 0.0
    %475 = vmatprep.subr.mxu0 0.0
    %476 = vmatpush1.msra.mxu0 0.0
    %477 = vmatprep.subr.mxu0 0.0
    %478 = vmatpush1.msra.mxu0 0.0
    %479 = vmatprep.subr.mxu0 0.0
    %480 = vmatpush1.msra.mxu0 0.0
    %481 = vmatprep.subr.mxu0 0.0
    %482 = vmatpush1.msra.mxu0 0.0
    %483 = vmatprep.subr.mxu0 0.0
    %484 = vmatpush1.msra.mxu0 0.0
    %485 = vmatprep.subr.mxu0 0.0
    %486 = vmatpush1.msra.mxu0 0.0
    %487 = vmatprep.subr.mxu0 0.0
    %488 = vmatpush1.msra.mxu0 0.0
    %489 = vmatprep.subr.mxu0 0.0
    %490 = vmatpush1.msra.mxu0 0.0
    %491 = vmatprep.subr.mxu0 0.0
    %492 = vmatpush1.msra.mxu0 0.0
    %493 = vmatprep.subr.mxu0 0.0
    %494 = vmatpush1.msra.mxu0 0.0
    %495 = vmatprep.subr.mxu0 0.0
    %496 = vmatpush1.msra.mxu0 0.0
    %497 = vmatprep.subr.mxu0 0.0
    %498 = vmatpush1.msra.mxu0 0.0
    %499 = vmatprep.subr.mxu0 0.0
    %500 = vmatpush1.msra.mxu0 0.0
    %501 = vmatprep.subr.mxu0 0.0
    %502 = vmatpush1.msra.mxu0 0.0
    %503 = vmatprep.subr.mxu0 0.0
    %504 = vmatpush1.msra.mxu0 0.0
    %505 = vmatprep.subr.mxu0 0.0
    %506 = vmatpush1.msra.mxu0 0.0
    %507 = vmatprep.subr.mxu0 0.0
    %508 = vmatpush1.msra.mxu0 0.0
    %509 = vmatprep.subr.mxu0 0.0
    %510 = vmatpush1.msra.mxu0 0.0
    %511 = vmatprep.subr.mxu0 0.0
    %512 = vmatpush1.msra.mxu0 0.0
    %513 = vmatprep.subr.mxu0 0.0
    %514 = vmatpush1.msra.mxu0 0.0
    %515 = vmatprep.subr.mxu0 0.0
    %516 = vmatpush1.msra.mxu0 0.0
    %517 = vmatprep.subr.mxu0 0.0
    %518 = vmatpush1.msra.mxu0 0.0
    %519 = vmatprep.subr.mxu0 0.0
    %520 = vmatpush1.msra.mxu0 0.0
    %521 = vmatprep.subr.mxu0 0.0
    %522 = vmatpush1.msra.mxu0 0.0
    %523 = vmatprep.subr.mxu0 0.0
    %524 = vmatpush1.msra.mxu0 0.0
    %525 = vmatprep.subr.mxu0 0.0
    %526 = vmatpush1.msra.mxu0 0.0
    %527 = vmatprep.mubr.f32.mxu0 0.0
    %528 = vmatmul.mubr.f32.gmra.mrb[0].mxu0 %v440
    %v529 = vpop.f32.mrb[0].mxu0
    %v530 = vadd.f32 0.0, %v529
    %v531 = vpop.f32.mrb[0].mxu0
    %532 = vmatprep.mubr.f32.mxu0 0.0
    %533 = vmatmul.mubr.f32.gmra.mrb[0].mxu0 %v443
    %v534 = vpop.f32.mrb[0].mxu0
    %v535 = vadd.f32 0.0, %v534
    %v536 = vpop.f32.mrb[0].mxu0
    %537 = vmatprep.mubr.f32.mxu0 0.0
    %538 = vmatmul.mubr.f32.gmra.mrb[0].mxu0 %v446
    %v539 = vpop.f32.mrb[0].mxu0
    %v540 = vadd.f32 0.0, %v539
    %v541 = vpop.f32.mrb[0].mxu0
    %542 = vmatprep.mubr.f32.mxu0 0.0
    %543 = vmatmul.mubr.f32.gmra.mrb[0].mxu0 %v449
    %v544 = vpop.f32.mrb[0].mxu0
    %v545 = vadd.f32 0.0, %v544
    %v546 = vpop.f32.mrb[0].mxu0
    %547 = vmatprep.mubr.f32.mxu0 0.0
    %548 = vmatmul.mubr.f32.gmra.mrb[0].mxu0 %v452
    %v549 = vpop.f32.mrb[0].mxu0
    %v550 = vadd.f32 0.0, %v549
    %v551 = vpop.f32.mrb[0].mxu0
    %552 = vmatprep.mubr.f32.mxu0 0.0
    %553 = vmatmul.mubr.f32.gmra.mrb[0].mxu0 %v455
    %v554 = vpop.f32.mrb[0].mxu0
    %v555 = vadd.f32 0.0, %v554
    %v556 = vpop.f32.mrb[0].mxu0
    %557 = vmatprep.mubr.f32.mxu0 0.0
    %558 = vmatmul.mubr.f32.gmra.mrb[0].mxu0 %v458
    %v559 = vpop.f32.mrb[0].mxu0
    %v560 = vadd.f32 0.0, %v559
    %v561 = vpop.f32.mrb[0].mxu0
    %562 = vmatprep.mubr.f32.mxu0 0.0
    %563 = vmatmul.mubr.f32.gmra.mrb[0].mxu0 %v461
    %v564 = vpop.f32.mrb[0].mxu0
    %v565 = vadd.f32 0.0, %v564
    %v566 = vpop.f32.mrb[0].mxu0
    %567 = vdwg.mxu0
    %s568 = scalar_lea.vmem [#allocation3], 1
    %v569 = vld [vmem:[%s568] sm:$0x1]
    %v570 = vsel %vm100, %v530, -inf
    %v571 = vsel %vm100, %v535, -inf
    %v572 = vsel %vm100, %v540, -inf
    %v573 = vsel %vm100, %v545, -inf
    %v574 = vsel %vm100, %v550, -inf
    %v575 = vmax.f32 %v570, %v574
    %v576 = vsel %vm100, %v555, -inf
    %v577 = vmax.f32 %v571, %v576
    %v578 = vsel %vm100, %v560, -inf
    %v579 = vmax.f32 %v572, %v578
    %v580 = vsel %vm100, %v565, -inf
    %v581 = vmax.f32 %v573, %v580
    %v582 = vmax.f32 %v575, %v577
    %v583 = vmax.f32 %v579, %v581
    %v584 = vmax.f32 %v582, %v583
    %v585 = vrot.slane %v584, 4
    %v586 = vmax.f32 %v584, %v585
    %v587 = vrot.slane %v586, 2
    %v588 = vmax.f32 %v586, %v587
    %v589 = vrot.slane %v588, 1
    %v590 = vmax.f32 %v588, %v589
    %v591 = vmax.f32 %v569, %v590
    %v592 = vsub.f32 %v569, %v591
    %v593 = vmul.f32 %v592, 1.442695
    %v594 = vpow.pop %v593
    %s595 = scalar_lea.vmem [#allocation4], 1
    %v596 = vld [vmem:[%s595] sm:$0x1]
    %v597 = vmul.f32 %v594, %v596
    %v599 = vlaneseq
    %v600 = vshrl.u32 %v599, 7
    %v601 = vsub.s32 0, %v600
    %v602 = vrot.slane %v591, %v601
    %v604 = vsub.f32 %v530, %v602
    %v605 = vsub.f32 %v535, %v602
    %v606 = vsub.f32 %v540, %v602
    %v607 = vsub.f32 %v545, %v602
    %v608 = vsub.f32 %v550, %v602
    %v609 = vsub.f32 %v555, %v602
    %v610 = vsub.f32 %v560, %v602
    %v611 = vsub.f32 %v565, %v602
    %v612 = vmul.f32 %v604, 1.442695
    %v613 = vpow.pop %v612
    %v614 = vmul.f32 %v605, 1.442695
    %v615 = vpow.pop %v614
    %v616 = vmul.f32 %v606, 1.442695
    %v617 = vpow.pop %v616
    %v618 = vmul.f32 %v607, 1.442695
    %v619 = vpow.pop %v618
    %v620 = vmul.f32 %v608, 1.442695
    %v621 = vpow.pop %v620
    %v622 = vmul.f32 %v609, 1.442695
    %v623 = vpow.pop %v622
    %v624 = vmul.f32 %v610, 1.442695
    %v625 = vpow.pop %v624
    %v626 = vmul.f32 %v611, 1.442695
    %v627 = vpow.pop %v626
    %v628 = vsel %vm100, %v613, 0.0
    %v629 = vsel %vm100, %v615, 0.0
    %v630 = vadd.f32 %v628, %v629
    %v631 = vsel %vm100, %v617, 0.0
    %v632 = vadd.f32 %v630, %v631
    %v633 = vsel %vm100, %v619, 0.0
    %v634 = vadd.f32 %v632, %v633
    %v635 = vsel %vm100, %v621, 0.0
    %v636 = vadd.f32 %v634, %v635
    %v637 = vsel %vm100, %v623, 0.0
    %v638 = vadd.f32 %v636, %v637
    %v639 = vsel %vm100, %v625, 0.0
    %v640 = vadd.f32 %v638, %v639
    %v641 = vsel %vm100, %v627, 0.0
    %v642 = vadd.f32 %v640, %v641
    %v643 = vrot.slane %v642, 4
    %v644 = vadd.f32 %v642, %v643
    %v645 = vrot.slane %v644, 2
    %v646 = vadd.f32 %v644, %v645
    %v647 = vrot.slane %v646, 1
    %v648 = vadd.f32 %v646, %v647
    %v649 = vadd.f32 %v597, %v648
    %650 = vst.msk [vmem:[%s595] sm:$0x1] %vm126, %v649
    %651 = vst.msk [vmem:[%s568] sm:$0x1] %vm126, %v591
    // Predicated region
    $region22: #{tpu_custom_call.1} parent=1 // pred_check
      %p652 = pneg %p40
    $region23: #{tpu_custom_call.1} parent=1 // pred_check_branch
      %654 = sbr.rel (%p652) target = $region25
    $region24: #{tpu_custom_call.1} parent=1 // pred_region
      %v655 = vld [vmem:[#allocation3] sm:$0x1]
      %v656 = vld [vmem:[#allocation3 + $0x1] sm:$0x1]
      %v657 = vld [vmem:[#allocation4] sm:$0x1]
      %v658 = vld [vmem:[#allocation4 + $0x1] sm:$0x1]
      %v659 = vlog2.pop %v657
      %v660 = vmul.f32 %v659, 0.6931472
      %v661 = vlog2.pop %v658
      %v662 = vmul.f32 %v661, 0.6931472
      %v663 = vadd.f32 %v655, %v660
      %v664 = vadd.f32 %v656, %v662
      %v665 = vld [vmem:[#allocation5] sm:$0x1]
      %v666 = vld [vmem:[#allocation5 + $0x1] sm:$0x1]
      %v667 = vsub.f32 %v663, %v665
      %v668 = vsub.f32 %v664, %v666
      %669 = vst.msk [vmem:[#allocation11] sm:$0x1] %vm126, %v667
      %670 = vst.msk [vmem:[#allocation11 + $0x1] sm:$0x1] %vm126, %v668
    $region25: #{tpu_custom_call.1} parent=1 // pred_fallthru
      _
    // Predicated region
    $region26: #{tpu_custom_call.1} parent=1 // pred_check
      _
    $region27: #{tpu_custom_call.1} parent=1 // pred_check_branch
      %672 = sbr.rel (0) target = $region29
    $region28: #{tpu_custom_call.1} parent=1 // pred_region
      %s674 = ssub.s32 32, 32
      %675 = vsyncadd [#allocation8], %s674
      %s676 = sshll.u32 [#allocation11], 4
      %s677 = int_to_ptr.vmem [resolvable:$true] %s676
      %682 = dma.vmem_to_hbm [thread:$0]  %s677, 32, %s2, [#allocation8], 16, 16, 1
    $region29: #{tpu_custom_call.1} parent=1 // pred_fallthru
      _
    // Predicated region
    $region30: #{tpu_custom_call.1} parent=1 // pred_check
      _
    $region31: #{tpu_custom_call.1} parent=1 // pred_check_branch
      %684 = sbr.rel (0) target = $region33
    $region32: #{tpu_custom_call.1} parent=1 // pred_region
      %685 = dma.done [#allocation8], 32
    $region33: #{tpu_custom_call.1} parent=1 // pred_fallthru
      _
    %686 = vsyncpa [#allocation7], 1
    %687 = vsyncpa [#allocation10], 1
    %688 = vsyncpa [#allocation8], 1

</llo_original>
